<compile_context>
chip_gen: v7x
topology: tpu7x:2x2x1
jax: 0.10.0
libtpu: 0.0.40
codegen_flags: <defaults>
</compile_context>

<pallas_src>
import functools

import jax
import jax.numpy as jnp
from jax.experimental import pallas as pl
from jax.experimental.pallas import tpu as pltpu


# Set to jax.lax.Precision.HIGHEST for bit-strict fp32 parity with PyTorch;
# None (default) already meets 1e-3 at these accumulation depths.
_F32_PRECISION = None


def prehead_kernel(x_ref, w1_ref, b1_ref, w2_ref, b2_ref, o_ref, *,
                   block_n, precision):
    w1 = w1_ref[...]                     # (Ch, Ci)  f32 or bf16
    w2 = w2_ref[...]                     # (Co, Ch)
    hw = o_ref.shape[-1]                 # lane-dense HW tile

    # Hoist the bias lane-broadcasts out of the batch loop (no CSE otherwise).
    b1 = jnp.broadcast_to(b1_ref[...], (w1.shape[0], hw))   # (Ch, HW) f32
    b2 = jnp.broadcast_to(b2_ref[...], (w2.shape[0], hw))   # (Co, HW) f32

    def one(n):
        x = x_ref[n]                                                   # (Ci, HW)
        h = jnp.dot(w1, x, preferred_element_type=jnp.float32,
                    precision=precision) + b1                          # (Ch, HW) f32
        h = jnp.maximum(h, 0.0).astype(w2.dtype)                       # ReLU
        y = jnp.dot(w2, h, preferred_element_type=jnp.float32,
                    precision=precision) + b2                          # (Co, HW) f32
        o_ref[n] = y.astype(o_ref.dtype)

    if block_n <= 4:
        # Short, fixed trip count: unrolled and visible to the LLO scheduler.
        for n in range(block_n):
            one(n)
    else:
        # Large trip count: bound live ranges to one iteration.
        def body(n, carry):
            one(n)
            return carry
        jax.lax.fori_loop(0, block_n, body, 0)


def _device_kind():
    try:
        return jax.devices()[0].device_kind.lower()
    except Exception:
        return ""


def _is_v7x():
    kind = _device_kind()
    return any(tag in kind for tag in ("v7", "tpu7", "7x"))


def _tpu_vmem_bytes():
    # Physical VMEM: 128 MiB on v5e/v6e, 64 MiB per TC on v7x.
    try:
        return int(pltpu.get_tpu_info().vmem_capacity_bytes)
    except Exception:
        return 64 << 20          # conservative (v7x) fallback


def _pick_block_n(n, per_batch_bytes):
    # Single grid step on 1-TC chips (v5e/v6e); split the batch on v7x only
    # when each core gets a worthwhile amount of HBM traffic (a few us).
    if _is_v7x() and n >= 2 and n % 2 == 0 and (n // 2) * per_batch_bytes >= (4 << 20):
        return n // 2
    return n


def _pick_hw_tile(hw, ci, co, block_n, x_bytes, out_bytes, budget_bytes):
    if hw % 128 != 0:
        return hw                # full-HW block equals the array dim: legal

    def step_bytes(t):
        # Double-buffered x + out tiles per grid step (hidden stays in vregs).
        return 2 * block_n * t * (ci * x_bytes + co * out_bytes)

    tile = hw
    # Keep tiles lane-dense (multiple of 128) and >= 512 lanes.
    while step_bytes(tile) > budget_bytes and tile % 256 == 0 and tile // 2 >= 512:
        tile //= 2
    return tile


def prehead(x_nchw, params, *, use_bf16=True):
    """x_nchw: (N, Cin, H, W). params: w1 (Ch,Ci), b1 (Ch,1), w2 (Co,Ch), b2 (Co,1)."""
    N, Ci, H, W = x_nchw.shape
    HW = H * W
    Ch = params["w1"].shape[0]
    Co = params["w2"].shape[0]

    x = x_nchw.reshape(N, Ci, HW)            # free: no data movement from NCHW

    # bf16 fast path: halves the bytes the kernel has to move and doubles MXU
    # rate on v6e/v7x (on v5e it also avoids the multi-pass f32 penalty).
    # In a real model the producer would emit bf16 directly; here it's a cast.
    cdt = jnp.bfloat16 if use_bf16 else jnp.float32
    x_k = x.astype(cdt)
    w1 = params["w1"].astype(cdt)
    w2 = params["w2"].astype(cdt)
    b1 = params["b1"].astype(jnp.float32)     # bias/ReLU stay f32
    b2 = params["b2"].astype(jnp.float32)
    out_dtype = cdt
    precision = _F32_PRECISION if not use_bf16 else None

    x_bp = jnp.dtype(cdt).itemsize
    out_bp = jnp.dtype(out_dtype).itemsize

    vmem_cap = _tpu_vmem_bytes()
    tile_budget = min(24 << 20, vmem_cap // 4)

    per_batch_bytes = HW * (Ci * x_bp + Co * out_bp)
    block_n = _pick_block_n(N, per_batch_bytes)
    hw_tile = _pick_hw_tile(HW, Ci, Co, block_n, x_bp, out_bp, tile_budget)

    grid = (N // block_n, HW // hw_tile)

    w_bytes = (Ch * Ci + Co * Ch) * x_bp + (Ch + Co) * 4
    needed = 2 * block_n * hw_tile * (Ci * x_bp + Co * out_bp) + w_bytes + (1 << 20)
    vmem_limit = int(min(max(needed + (8 << 20), 32 << 20),
                         max(32 << 20, vmem_cap - (16 << 20))))

    const = lambda shape: pl.BlockSpec(shape, lambda b, t: (0,) * len(shape))

    # x is dead after the kernel; alias it onto the output when tiles match
    # exactly (same dtype, Ci == Co, identical block shapes & index maps).
    io_alias = {0: 0} if Ci == Co else {}

    out = pl.pallas_call(
        functools.partial(prehead_kernel, block_n=block_n, precision=precision),
        out_shape=jax.ShapeDtypeStruct((N, Co, HW), out_dtype),
        grid_spec=pltpu.PrefetchScalarGridSpec(
            num_scalar_prefetch=0,
            grid=grid,
            in_specs=[
                pl.BlockSpec((block_n, Ci, hw_tile), lambda b, t: (b, 0, t)),  # x
                const((Ch, Ci)),                                               # w1
                const((Ch, 1)),                                                # b1
                const((Co, Ch)),                                               # w2
                const((Co, 1)),                                                # b2
            ],
            out_specs=pl.BlockSpec((block_n, Co, hw_tile), lambda b, t: (b, 0, t)),
        ),
        input_output_aliases=io_alias,
        compiler_params=pltpu.CompilerParams(
            dimension_semantics=("parallel", "parallel"),
            vmem_limit_bytes=vmem_limit),
    )(x_k, w1, b1, w2, b2)

    return out.reshape(N, Co, H, W)           # free


# bf16 fast path (default) and f32 strict-parity path (x donated so the
# in/out alias can actually reuse the HBM buffer).
prehead_jit_bf16 = jax.jit(functools.partial(prehead, use_bf16=True))
prehead_jit_f32 = jax.jit(functools.partial(prehead, use_bf16=False),
                          donate_argnums=(0,))


def init_params(key, input_dim, hidden_dim, out_dim):
    # Matches nn.Conv2d default init: U(-1/sqrt(fan_in), 1/sqrt(fan_in)).
    k1, k2, k3, k4 = jax.random.split(key, 4)
    s1 = 1.0 / jnp.sqrt(jnp.float32(input_dim))
    s2 = 1.0 / jnp.sqrt(jnp.float32(hidden_dim))
    # Conv weights stored as (Cout, Cin) so the 1x1 conv is W @ x in (C, HW).
    w1 = jax.random.uniform(k1, (hidden_dim, input_dim), jnp.float32, -s1, s1)
    b1 = jax.random.uniform(k2, (hidden_dim, 1), jnp.float32, -s1, s1)
    w2 = jax.random.uniform(k3, (out_dim, hidden_dim), jnp.float32, -s2, s2)
    b2 = jax.random.uniform(k4, (out_dim, 1), jnp.float32, -s2, s2)
    return dict(w1=w1, b1=b1, w2=w2, b2=b2)


def reference_jax(x_nchw, params):
    # Pure-JAX reference of preHead.forward (NCHW, f32).
    y = (jnp.einsum("oc,nchw->nohw", params["w1"], x_nchw)
         + params["b1"].reshape(1, -1, 1, 1))
    y = jax.nn.relu(y)
    y = (jnp.einsum("oc,nchw->nohw", params["w2"], y)
         + params["b2"].reshape(1, -1, 1, 1))
    return y


if __name__ == "__main__":
    key = jax.random.PRNGKey(0)
    kx, kp = jax.random.split(key)

    # Small preHead: input_dim=32, hidden_dim=64, out_dim=32, 16x16 spatial.
    N, Ci, H, W = 2, 32, 16, 16
    Ch, Co = 64, 32

    x = jax.random.normal(kx, (N, Ci, H, W), jnp.float32)
    params = init_params(kp, Ci, Ch, Co)

    ref = reference_jax(x, params)

    # 1) bf16 fast path (default): looser tolerance from input quantization.
    out_bf16 = jax.block_until_ready(prehead_jit_bf16(x, params))
    assert out_bf16.shape == (N, Co, H, W)
    err_bf16 = float(jnp.max(jnp.abs(out_bf16.astype(jnp.float32) - ref)))
    assert err_bf16 < 5e-2, f"bf16 path mismatch vs JAX reference: {err_bf16}"

    # 2) f32 strict-parity path (x donated; output aliases the dead input).
    out_f32 = jax.block_until_ready(prehead_jit_f32(x, params))
    assert out_f32.shape == (N, Co, H, W)
    err_f32 = float(jnp.max(jnp.abs(out_f32 - ref)))
    assert err_f32 < 1e-3, f"f32 path mismatch vs JAX reference: {err_f32}"

    print("KERNEL_OK")
</pallas_src>

<mosaic_0001>
module attributes {stable_mosaic.version = 11 : i64} {
  func.func @prehead_kernel(%arg0: i32, %arg1: i32, %arg2: memref<2x32x256xbf16, #tpu.memory_space<vmem>>, %arg3: memref<64x32xbf16, #tpu.memory_space<vmem>>, %arg4: memref<64x1xf32, #tpu.memory_space<vmem>>, %arg5: memref<32x64xbf16, #tpu.memory_space<vmem>>, %arg6: memref<32x1xf32, #tpu.memory_space<vmem>>, %arg7: memref<2x32x256xbf16, #tpu.memory_space<vmem>>) attributes {dimension_semantics = [#tpu.dimension_semantics<parallel>, #tpu.dimension_semantics<parallel>], iteration_bounds = array<i64: 1, 1>, scalar_prefetch = 0 : i64, scratch_operands = 0 : i64, tpu.core_type = #tpu.core_type<tc>, window_params = [{transform_indices = @transform_0, window_bounds = array<i64: 2, 32, 256>}, {pipeline_mode = #tpu.pipeline_mode<synchronous>, transform_indices = @transform_1, window_bounds = array<i64: 64, 32>}, {pipeline_mode = #tpu.pipeline_mode<synchronous>, transform_indices = @transform_2, window_bounds = array<i64: 64, 1>}, {pipeline_mode = #tpu.pipeline_mode<synchronous>, transform_indices = @transform_3, window_bounds = array<i64: 32, 64>}, {pipeline_mode = #tpu.pipeline_mode<synchronous>, transform_indices = @transform_4, window_bounds = array<i64: 32, 1>}, {transform_indices = @transform_5, window_bounds = array<i64: 2, 32, 256>}]} {
    %c0 = arith.constant 0 : index
    %c0_0 = arith.constant 0 : index
    %0 = vector.load %arg3[%c0, %c0_0] : memref<64x32xbf16, #tpu.memory_space<vmem>>, vector<64x32xbf16>
    %c0_1 = arith.constant 0 : index
    %c0_2 = arith.constant 0 : index
    %1 = vector.load %arg5[%c0_1, %c0_2] : memref<32x64xbf16, #tpu.memory_space<vmem>>, vector<32x64xbf16>
    %c0_3 = arith.constant 0 : index
    %c0_4 = arith.constant 0 : index
    %2 = vector.load %arg4[%c0_3, %c0_4] : memref<64x1xf32, #tpu.memory_space<vmem>>, vector<64x1xf32>
    %3 = vector.shape_cast %2 : vector<64x1xf32> to vector<64x1xf32>
    %4 = vector.broadcast %3 : vector<64x1xf32> to vector<64x256xf32>
    %c0_5 = arith.constant 0 : index
    %c0_6 = arith.constant 0 : index
    %5 = vector.load %arg6[%c0_5, %c0_6] : memref<32x1xf32, #tpu.memory_space<vmem>>, vector<32x1xf32>
    %6 = vector.shape_cast %5 : vector<32x1xf32> to vector<32x1xf32>
    %7 = vector.broadcast %6 : vector<32x1xf32> to vector<32x256xf32>
    %c0_7 = arith.constant 0 : index
    %c0_8 = arith.constant 0 : index
    %c0_9 = arith.constant 0 : index
    %8 = vector.load %arg2[%c0_7, %c0_8, %c0_9] : memref<2x32x256xbf16, #tpu.memory_space<vmem>>, vector<1x32x256xbf16>
    %9 = vector.shape_cast %8 : vector<1x32x256xbf16> to vector<32x256xbf16>
    %cst = arith.constant dense<0.000000e+00> : vector<64x256xf32>
    %10 = tpu.matmul %0, %9, %cst {dimension_numbers = #tpu.dot_dimension_numbers<[1], [0], [0], [1], [0, 0, 1, 1], [], []>} : vector<64x32xbf16>, vector<32x256xbf16>, vector<64x256xf32> -> vector<64x256xf32>
    %11 = arith.addf %10, %4 : vector<64x256xf32>
    %cst_10 = arith.constant 0.000000e+00 : f32
    %12 = vector.broadcast %cst_10 : f32 to vector<64x256xf32>
    %13 = arith.maximumf %11, %12 : vector<64x256xf32>
    %14 = arith.truncf %13 : vector<64x256xf32> to vector<64x256xbf16>
    %cst_11 = arith.constant dense<0.000000e+00> : vector<32x256xf32>
    %15 = tpu.matmul %1, %14, %cst_11 {dimension_numbers = #tpu.dot_dimension_numbers<[1], [0], [0], [1], [0, 0, 1, 1], [], []>} : vector<32x64xbf16>, vector<64x256xbf16>, vector<32x256xf32> -> vector<32x256xf32>
    %16 = arith.addf %15, %7 : vector<32x256xf32>
    %17 = arith.truncf %16 : vector<32x256xf32> to vector<32x256xbf16>
    %c0_12 = arith.constant 0 : index
    %c0_13 = arith.constant 0 : index
    %c0_14 = arith.constant 0 : index
    %18 = vector.load %arg7[%c0_12, %c0_13, %c0_14] : memref<2x32x256xbf16, #tpu.memory_space<vmem>>, vector<1x32x256xbf16>
    %19 = vector.shape_cast %18 : vector<1x32x256xbf16> to vector<32x256xbf16>
    %20 = vector.shape_cast %17 : vector<32x256xbf16> to vector<1x32x256xbf16>
    tpu.vector_store %arg7[%c0_12, %c0_13, %c0_14], %20 {strides = array<i32>} : memref<2x32x256xbf16, #tpu.memory_space<vmem>>, vector<1x32x256xbf16>,
    %c1 = arith.constant 1 : index
    %c0_15 = arith.constant 0 : index
    %c0_16 = arith.constant 0 : index
    %21 = vector.load %arg2[%c1, %c0_15, %c0_16] : memref<2x32x256xbf16, #tpu.memory_space<vmem>>, vector<1x32x256xbf16>
    %22 = vector.shape_cast %21 : vector<1x32x256xbf16> to vector<32x256xbf16>
    %cst_17 = arith.constant dense<0.000000e+00> : vector<64x256xf32>
    %23 = tpu.matmul %0, %22, %cst_17 {dimension_numbers = #tpu.dot_dimension_numbers<[1], [0], [0], [1], [0, 0, 1, 1], [], []>} : vector<64x32xbf16>, vector<32x256xbf16>, vector<64x256xf32> -> vector<64x256xf32>
    %24 = arith.addf %23, %4 : vector<64x256xf32>
    %cst_18 = arith.constant 0.000000e+00 : f32
    %25 = vector.broadcast %cst_18 : f32 to vector<64x256xf32>
    %26 = arith.maximumf %24, %25 : vector<64x256xf32>
    %27 = arith.truncf %26 : vector<64x256xf32> to vector<64x256xbf16>
    %cst_19 = arith.constant dense<0.000000e+00> : vector<32x256xf32>
    %28 = tpu.matmul %1, %27, %cst_19 {dimension_numbers = #tpu.dot_dimension_numbers<[1], [0], [0], [1], [0, 0, 1, 1], [], []>} : vector<32x64xbf16>, vector<64x256xbf16>, vector<32x256xf32> -> vector<32x256xf32>
    %29 = arith.addf %28, %7 : vector<32x256xf32>
    %30 = arith.truncf %29 : vector<32x256xf32> to vector<32x256xbf16>
    %c1_20 = arith.constant 1 : index
    %c0_21 = arith.constant 0 : index
    %c0_22 = arith.constant 0 : index
    %31 = vector.load %arg7[%c1_20, %c0_21, %c0_22] : memref<2x32x256xbf16, #tpu.memory_space<vmem>>, vector<1x32x256xbf16>
    %32 = vector.shape_cast %31 : vector<1x32x256xbf16> to vector<32x256xbf16>
    %33 = vector.shape_cast %30 : vector<32x256xbf16> to vector<1x32x256xbf16>
    tpu.vector_store %arg7[%c1_20, %c0_21, %c0_22], %33 {strides = array<i32>} : memref<2x32x256xbf16, #tpu.memory_space<vmem>>, vector<1x32x256xbf16>,
    return
  }
  func.func @transform_0(%arg0: i32, %arg1: i32) -> (i32, i32, i32) {
    %c0_i32 = arith.constant 0 : i32
    %c0_i32_0 = arith.constant 0 : i32
    return %arg0, %c0_i32, %arg1 : i32, i32, i32
  }
  func.func @transform_1(%arg0: i32, %arg1: i32) -> (i32, i32) {
    %c0_i32 = arith.constant 0 : i32
    %c0_i32_0 = arith.constant 0 : i32
    %c0_i32_1 = arith.constant 0 : i32
    return %c0_i32, %c0_i32_0 : i32, i32
  }
  func.func @transform_2(%arg0: i32, %arg1: i32) -> (i32, i32) {
    %c0_i32 = arith.constant 0 : i32
    %c0_i32_0 = arith.constant 0 : i32
    %c0_i32_1 = arith.constant 0 : i32
    return %c0_i32, %c0_i32_0 : i32, i32
  }
  func.func @transform_3(%arg0: i32, %arg1: i32) -> (i32, i32) {
    %c0_i32 = arith.constant 0 : i32
    %c0_i32_0 = arith.constant 0 : i32
    %c0_i32_1 = arith.constant 0 : i32
    return %c0_i32, %c0_i32_0 : i32, i32
  }
  func.func @transform_4(%arg0: i32, %arg1: i32) -> (i32, i32) {
    %c0_i32 = arith.constant 0 : i32
    %c0_i32_0 = arith.constant 0 : i32
    %c0_i32_1 = arith.constant 0 : i32
    return %c0_i32, %c0_i32_0 : i32, i32
  }
  func.func @transform_5(%arg0: i32, %arg1: i32) -> (i32, i32, i32) {
    %c0_i32 = arith.constant 0 : i32
    %c0_i32_0 = arith.constant 0 : i32
    return %arg0, %c0_i32, %arg1 : i32, i32, i32
  }
}

</mosaic_0001>

<llo_original>
// kernel: prehead.1
$region0: #{prehead.1}
  #allocation0 [shape = 'u32[]', space=smem, size = 0x4, offset = 0x4, fixed_abs, tag = 'smem constant byte address 0x4 - core index']
  #allocation1 [shape = 'u32[144,128]{1,0:T(1,128)}', space=vmem, size = 0x12000, scoped, tag = 'internal scratch']
  %s0 = inlined_call_operand.vmem [shape: bf16[2,32,256], index: 0, kind: input, shape index: {}, may-alias: {0,5}]
  %s1 = inlined_call_operand.vmem [shape: bf16[64,32], index: 1, kind: input, shape index: {}]
  %s2 = inlined_call_operand.vmem [shape: f32[64,1], index: 2, kind: input, shape index: {}]
  %s3 = inlined_call_operand.vmem [shape: bf16[32,64], index: 3, kind: input, shape index: {}]
  %s4 = inlined_call_operand.vmem [shape: f32[32,1], index: 4, kind: input, shape index: {}]
  %s5 = inlined_call_operand.vmem [shape: bf16[2,32,256], index: 5, kind: output, shape index: {}, may-alias: {0,5}]
  %s6 = sld [smem:[#allocation0]]
  $region30: #{prehead.1} parent=0
    _
  %s8 = ssub.s32 1, %s6
  %s9 = scalar_select 0, %s8, %s6
  // Predicated region
  $region2: #{prehead.1} parent=0 // pred_check
    _
  $region3: #{prehead.1} parent=0 // pred_check_branch
    %11 = sbr.rel (0) target = $region5
  $region4: #{prehead.1} parent=0 // pred_region
    _
  $region5: #{prehead.1} parent=0 // pred_fallthru
    _
  // Predicated region
  $region6: #{prehead.1} parent=0 // pred_check
    _
  $region7: #{prehead.1} parent=0 // pred_check_branch
    %13 = sbr.rel (0) target = $region9
  $region8: #{prehead.1} parent=0 // pred_region
    _
  $region9: #{prehead.1} parent=0 // pred_fallthru
    _
  // Predicated region
  $region10: #{prehead.1} parent=0 // pred_check
    _
  $region11: #{prehead.1} parent=0 // pred_check_branch
    %15 = sbr.rel (0) target = $region13
  $region12: #{prehead.1} parent=0 // pred_region
    _
  $region13: #{prehead.1} parent=0 // pred_fallthru
    _
  // Predicated region
  $region14: #{prehead.1} parent=0 // pred_check
    _
  $region15: #{prehead.1} parent=0 // pred_check_branch
    %17 = sbr.rel (0) target = $region17
  $region16: #{prehead.1} parent=0 // pred_region
    _
  $region17: #{prehead.1} parent=0 // pred_fallthru
    _
  // Predicated region
  $region18: #{prehead.1} parent=0 // pred_check
    _
  $region19: #{prehead.1} parent=0 // pred_check_branch
    %19 = sbr.rel (0) target = $region21
  $region20: #{prehead.1} parent=0 // pred_region
    _
  $region21: #{prehead.1} parent=0 // pred_fallthru
    _
  %v21 = vld [vmem:[%s1] sm:$0xf]
  %v22 = vld [vmem:[%s1 + $0x4] sm:$0xf]
  %v23 = vld [vmem:[%s1 + $0x8] sm:$0xf]
  %v24 = vld [vmem:[%s1 + $0xc] sm:$0xf]
  %v25 = vld [vmem:[%s1 + $0x10] sm:$0xf]
  %v26 = vld [vmem:[%s1 + $0x14] sm:$0xf]
  %v27 = vld [vmem:[%s1 + $0x18] sm:$0xf]
  %v28 = vld [vmem:[%s1 + $0x1c] sm:$0xf]
  %v29 = vld [vmem:[%s3] sm:$0xf]
  %v30 = vld [vmem:[%s3 + $0x4] sm:$0xf]
  %v31 = vld [vmem:[%s3 + $0x8] sm:$0xf]
  %v32 = vld [vmem:[%s3 + $0xc] sm:$0xf]
  %v33 = vld [vmem:[%s2] sm:$0xff]
  %v34 = vld [vmem:[%s2 + $0x8] sm:$0xff]
  %v35 = vld [vmem:[%s2 + $0x10] sm:$0xff]
  %v36 = vld [vmem:[%s2 + $0x18] sm:$0xff]
  %v37 = vld [vmem:[%s2 + $0x20] sm:$0xff]
  %v38 = vld [vmem:[%s2 + $0x28] sm:$0xff]
  %v39 = vld [vmem:[%s2 + $0x30] sm:$0xff]
  %v40 = vld [vmem:[%s2 + $0x38] sm:$0xff]
  %42 = vset.pattern.permute.xlu0 0
  %43 = vperm.xlu0 %42, %v33
  %v44 = vpop.permute.xlu0 %43
  %47 = vset.pattern.permute.xlu0 0
  %48 = vperm.xlu0 %47, %v34
  %v49 = vpop.permute.xlu0 %48
  %52 = vset.pattern.permute.xlu0 0
  %53 = vperm.xlu0 %52, %v35
  %v54 = vpop.permute.xlu0 %53
  %57 = vset.pattern.permute.xlu0 0
  %58 = vperm.xlu0 %57, %v36
  %v59 = vpop.permute.xlu0 %58
  %62 = vset.pattern.permute.xlu0 0
  %63 = vperm.xlu0 %62, %v37
  %v64 = vpop.permute.xlu0 %63
  %67 = vset.pattern.permute.xlu0 0
  %68 = vperm.xlu0 %67, %v38
  %v69 = vpop.permute.xlu0 %68
  %72 = vset.pattern.permute.xlu0 0
  %73 = vperm.xlu0 %72, %v39
  %v74 = vpop.permute.xlu0 %73
  %77 = vset.pattern.permute.xlu0 0
  %78 = vperm.xlu0 %77, %v40
  %v79 = vpop.permute.xlu0 %78
  %v81 = vld [vmem:[%s4] sm:$0xff]
  %v82 = vld [vmem:[%s4 + $0x8] sm:$0xff]
  %v83 = vld [vmem:[%s4 + $0x10] sm:$0xff]
  %v84 = vld [vmem:[%s4 + $0x18] sm:$0xff]
  %86 = vset.pattern.permute.xlu0 0
  %87 = vperm.xlu0 %86, %v81
  %v88 = vpop.permute.xlu0 %87
  %91 = vset.pattern.permute.xlu0 0
  %92 = vperm.xlu0 %91, %v82
  %v93 = vpop.permute.xlu0 %92
  %96 = vset.pattern.permute.xlu0 0
  %97 = vperm.xlu0 %96, %v83
  %v98 = vpop.permute.xlu0 %97
  %101 = vset.pattern.permute.xlu0 0
  %102 = vperm.xlu0 %101, %v84
  %v103 = vpop.permute.xlu0 %102
  %v105 = vld [vmem:[%s0] sm:$0xff]
  %v106 = vld [vmem:[%s0 + $0x8] sm:$0xff]
  %v107 = vld [vmem:[%s0 + $0x10] sm:$0xff]
  %v108 = vld [vmem:[%s0 + $0x18] sm:$0xff]
  %v117 = vunpack.c.l.b16 %v21
  %v118 = vunpack.c.l.b16 %v22
  %v119 = vunpack.c.l.b16 %v23
  %v120 = vunpack.c.l.b16 %v24
  %v121 = vunpack.c.l.b16 %v25
  %v122 = vunpack.c.l.b16 %v26
  %v123 = vunpack.c.l.b16 %v27
  %v124 = vunpack.c.l.b16 %v28
  %v125 = vpack.c.b16 %v118, %v117
  %v126 = vpack.c.b16 %v120, %v119
  %v127 = vpack.c.b16 %v122, %v121
  %v128 = vpack.c.b16 %v124, %v123
  %v133 = vunpack.c.l.b16 %v105
  %v134 = vunpack.c.h.b16 %v105
  %v135 = vunpack.c.l.b16 %v106
  %v136 = vunpack.c.h.b16 %v106
  %v137 = vunpack.c.l.b16 %v107
  %v138 = vunpack.c.h.b16 %v107
  %v139 = vunpack.c.l.b16 %v108
  %v140 = vunpack.c.h.b16 %v108
  %v141 = vpack.c.b16 %v135, %v133
  %v142 = vpack.c.b16 %v136, %v134
  %v143 = vpack.c.b16 %v139, %v137
  %v144 = vpack.c.b16 %v140, %v138
  %vm149 = vcmask 261120
  %v151 = vsel %vm149, %v125, 0
  %v154 = vsel %vm149, %v126, 0
  %v157 = vsel %vm149, %v127, 0
  %v160 = vsel %vm149, %v128, 0
  %162 = vmatprep.subr.bf16.mxu0 %v142
  %163 = vmatpush1.bf16.msra.mxu0 %v141
  %164 = vmatprep.subr.bf16.mxu0 %v144
  %165 = vmatpush1.bf16.msra.mxu0 %v143
  %166 = vmatprep.subr.bf16.mxu0 0
  %167 = vmatpush1.bf16.msra.mxu0 0
  %168 = vmatprep.subr.bf16.mxu0 0
  %169 = vmatpush1.bf16.msra.mxu0 0
  %170 = vmatprep.subr.bf16.mxu0 0
  %171 = vmatpush1.bf16.msra.mxu0 0
  %172 = vmatprep.subr.bf16.mxu0 0
  %173 = vmatpush1.bf16.msra.mxu0 0
  %174 = vmatprep.subr.bf16.mxu0 0
  %175 = vmatpush1.bf16.msra.mxu0 0
  %176 = vmatprep.subr.bf16.mxu0 0
  %177 = vmatpush1.bf16.msra.mxu0 0
  %178 = vmatprep.subr.bf16.mxu0 0
  %179 = vmatpush1.bf16.msra.mxu0 0
  %180 = vmatprep.subr.bf16.mxu0 0
  %181 = vmatpush1.bf16.msra.mxu0 0
  %182 = vmatprep.subr.bf16.mxu0 0
  %183 = vmatpush1.bf16.msra.mxu0 0
  %184 = vmatprep.subr.bf16.mxu0 0
  %185 = vmatpush1.bf16.msra.mxu0 0
  %186 = vmatprep.subr.bf16.mxu0 0
  %187 = vmatpush1.bf16.msra.mxu0 0
  %188 = vmatprep.subr.bf16.mxu0 0
  %189 = vmatpush1.bf16.msra.mxu0 0
  %190 = vmatprep.subr.bf16.mxu0 0
  %191 = vmatpush1.bf16.msra.mxu0 0
  %192 = vmatprep.subr.bf16.mxu0 0
  %193 = vmatpush1.bf16.msra.mxu0 0
  %194 = vmatprep.mubr.bf16.mxu0 0
  %195 = vmatmul.mubr.bf16.gmra.mrb[0].mxu0 %v151
  %v196 = vpop.f32.mrb[0].mxu0
  %v197 = vadd.f32 %v44, %v196
  %v198 = vpop.f32.mrb[0].mxu0
  %v199 = vadd.f32 %v44, %v198
  %v200 = vpop.f32.mrb[0].mxu0
  %v201 = vadd.f32 %v49, %v200
  %v202 = vpop.f32.mrb[0].mxu0
  %v203 = vadd.f32 %v49, %v202
  %204 = vmatprep.mubr.bf16.mxu0 0
  %205 = vmatmul.mubr.bf16.gmra.mrb[0].mxu0 %v154
  %v206 = vpop.f32.mrb[0].mxu0
  %v207 = vadd.f32 %v54, %v206
  %v208 = vpop.f32.mrb[0].mxu0
  %v209 = vadd.f32 %v54, %v208
  %v210 = vpop.f32.mrb[0].mxu0
  %v211 = vadd.f32 %v59, %v210
  %v212 = vpop.f32.mrb[0].mxu0
  %v213 = vadd.f32 %v59, %v212
  %214 = vmatprep.mubr.bf16.mxu0 0
  %215 = vmatmul.mubr.bf16.gmra.mrb[0].mxu0 %v157
  %v216 = vpop.f32.mrb[0].mxu0
  %v217 = vadd.f32 %v64, %v216
  %v218 = vpop.f32.mrb[0].mxu0
  %v219 = vadd.f32 %v64, %v218
  %v220 = vpop.f32.mrb[0].mxu0
  %v221 = vadd.f32 %v69, %v220
  %v222 = vpop.f32.mrb[0].mxu0
  %v223 = vadd.f32 %v69, %v222
  %224 = vmatprep.mubr.bf16.mxu0 0
  %225 = vmatmul.mubr.bf16.gmra.mrb[0].mxu0 %v160
  %v226 = vpop.f32.mrb[0].mxu0
  %v227 = vadd.f32 %v74, %v226
  %v228 = vpop.f32.mrb[0].mxu0
  %v229 = vadd.f32 %v74, %v228
  %v230 = vpop.f32.mrb[0].mxu0
  %v231 = vadd.f32 %v79, %v230
  %v232 = vpop.f32.mrb[0].mxu0
  %v233 = vadd.f32 %v79, %v232
  %234 = vdwg.mxu0
  %v235 = vmax.f32 %v197, 0.0
  %v236 = vmax.f32 %v199, 0.0
  %v237 = vmax.f32 %v201, 0.0
  %v238 = vmax.f32 %v203, 0.0
  %v239 = vmax.f32 %v207, 0.0
  %v240 = vmax.f32 %v209, 0.0
  %v241 = vmax.f32 %v211, 0.0
  %v242 = vmax.f32 %v213, 0.0
  %v243 = vmax.f32 %v217, 0.0
  %v244 = vmax.f32 %v219, 0.0
  %v245 = vmax.f32 %v221, 0.0
  %v246 = vmax.f32 %v223, 0.0
  %v247 = vmax.f32 %v227, 0.0
  %v248 = vmax.f32 %v229, 0.0
  %v249 = vmax.f32 %v231, 0.0
  %v250 = vmax.f32 %v233, 0.0
  %v251 = vpack.c.bf16 %v237, %v235
  %v252 = vpack.c.bf16 %v238, %v236
  %v253 = vpack.c.bf16 %v241, %v239
  %v254 = vpack.c.bf16 %v242, %v240
  %v255 = vpack.c.bf16 %v245, %v243
  %v256 = vpack.c.bf16 %v246, %v244
  %v257 = vpack.c.bf16 %v249, %v247
  %v258 = vpack.c.bf16 %v250, %v248
  %v263 = vunpack.c.l.b16 %v29
  %v264 = vunpack.c.l.b16 %v30
  %v265 = vunpack.c.l.b16 %v31
  %v266 = vunpack.c.l.b16 %v32
  %v267 = vpack.c.b16 %v264, %v263
  %v268 = vpack.c.b16 %v266, %v265
  %vm269 = vcmask 523264
  %v271 = vsel %vm269, %v267, 0
  %v274 = vsel %vm269, %v268, 0
  %276 = vmatprep.subr.bf16.mxu0 %v252
  %277 = vmatpush1.bf16.msra.mxu0 %v251
  %278 = vmatprep.subr.bf16.mxu0 %v254
  %279 = vmatpush1.bf16.msra.mxu0 %v253
  %280 = vmatprep.subr.bf16.mxu0 %v256
  %281 = vmatpush1.bf16.msra.mxu0 %v255
  %282 = vmatprep.subr.bf16.mxu0 %v258
  %283 = vmatpush1.bf16.msra.mxu0 %v257
  %284 = vmatprep.subr.bf16.mxu0 0
  %285 = vmatpush1.bf16.msra.mxu0 0
  %286 = vmatprep.subr.bf16.mxu0 0
  %287 = vmatpush1.bf16.msra.mxu0 0
  %288 = vmatprep.subr.bf16.mxu0 0
  %289 = vmatpush1.bf16.msra.mxu0 0
  %290 = vmatprep.subr.bf16.mxu0 0
  %291 = vmatpush1.bf16.msra.mxu0 0
  %292 = vmatprep.subr.bf16.mxu0 0
  %293 = vmatpush1.bf16.msra.mxu0 0
  %294 = vmatprep.subr.bf16.mxu0 0
  %295 = vmatpush1.bf16.msra.mxu0 0
  %296 = vmatprep.subr.bf16.mxu0 0
  %297 = vmatpush1.bf16.msra.mxu0 0
  %298 = vmatprep.subr.bf16.mxu0 0
  %299 = vmatpush1.bf16.msra.mxu0 0
  %300 = vmatprep.subr.bf16.mxu0 0
  %301 = vmatpush1.bf16.msra.mxu0 0
  %302 = vmatprep.subr.bf16.mxu0 0
  %303 = vmatpush1.bf16.msra.mxu0 0
  %304 = vmatprep.subr.bf16.mxu0 0
  %305 = vmatpush1.bf16.msra.mxu0 0
  %306 = vmatprep.subr.bf16.mxu0 0
  %307 = vmatpush1.bf16.msra.mxu0 0
  %308 = vmatprep.mubr.bf16.mxu0 0
  %309 = vmatmul.mubr.bf16.gmra.mrb[0].mxu0 %v271
  %v310 = vpop.f32.mrb[0].mxu0
  %v311 = vadd.f32 %v88, %v310
  %v312 = vpop.f32.mrb[0].mxu0
  %v313 = vadd.f32 %v88, %v312
  %v314 = vpop.f32.mrb[0].mxu0
  %v315 = vadd.f32 %v93, %v314
  %v316 = vpop.f32.mrb[0].mxu0
  %v317 = vadd.f32 %v93, %v316
  %318 = vmatprep.mubr.bf16.mxu0 0
  %319 = vmatmul.mubr.bf16.gmra.mrb[0].mxu0 %v274
  %v320 = vpop.f32.mrb[0].mxu0
  %v321 = vadd.f32 %v98, %v320
  %v322 = vpop.f32.mrb[0].mxu0
  %v323 = vadd.f32 %v98, %v322
  %v324 = vpop.f32.mrb[0].mxu0
  %v325 = vadd.f32 %v103, %v324
  %v326 = vpop.f32.mrb[0].mxu0
  %v327 = vadd.f32 %v103, %v326
  %328 = vdwg.mxu0
  %v329 = vpack.c.bf16 %v315, %v311
  %v330 = vpack.c.bf16 %v317, %v313
  %v331 = vpack.c.bf16 %v325, %v321
  %v332 = vpack.c.bf16 %v327, %v323
  %v337 = vunpack.c.l.b16 %v329
  %v338 = vunpack.c.l.b16 %v330
  %v339 = vunpack.c.h.b16 %v329
  %v340 = vunpack.c.h.b16 %v330
  %v341 = vunpack.c.l.b16 %v331
  %v342 = vunpack.c.l.b16 %v332
  %v343 = vunpack.c.h.b16 %v331
  %v344 = vunpack.c.h.b16 %v332
  %v345 = vpack.c.b16 %v338, %v337
  %v346 = vpack.c.b16 %v340, %v339
  %v347 = vpack.c.b16 %v342, %v341
  %v348 = vpack.c.b16 %v344, %v343
  %353 = vst [vmem:[%s5] sm:$0xff] %v345
  %354 = vst [vmem:[%s5 + $0x8] sm:$0xff] %v346
  %355 = vst [vmem:[%s5 + $0x10] sm:$0xff] %v347
  %356 = vst [vmem:[%s5 + $0x18] sm:$0xff] %v348
  %s357 = scalar_lea.vmem %s0, 32
  %v358 = vld [vmem:[%s357] sm:$0xff]
  %v359 = vld [vmem:[%s357 + $0x8] sm:$0xff]
  %v360 = vld [vmem:[%s357 + $0x10] sm:$0xff]
  %v361 = vld [vmem:[%s357 + $0x18] sm:$0xff]
  %v366 = vunpack.c.l.b16 %v358
  %v367 = vunpack.c.h.b16 %v358
  %v368 = vunpack.c.l.b16 %v359
  %v369 = vunpack.c.h.b16 %v359
  %v370 = vunpack.c.l.b16 %v360
  %v371 = vunpack.c.h.b16 %v360
  %v372 = vunpack.c.l.b16 %v361
  %v373 = vunpack.c.h.b16 %v361
  %v374 = vpack.c.b16 %v368, %v366
  %v375 = vpack.c.b16 %v369, %v367
  %v376 = vpack.c.b16 %v372, %v370
  %v377 = vpack.c.b16 %v373, %v371
  %382 = vmatprep.subr.bf16.mxu0 %v375
  %383 = vmatpush1.bf16.msra.mxu0 %v374
  %384 = vmatprep.subr.bf16.mxu0 %v377
  %385 = vmatpush1.bf16.msra.mxu0 %v376
  %386 = vmatprep.subr.bf16.mxu0 0
  %387 = vmatpush1.bf16.msra.mxu0 0
  %388 = vmatprep.subr.bf16.mxu0 0
  %389 = vmatpush1.bf16.msra.mxu0 0
  %390 = vmatprep.subr.bf16.mxu0 0
  %391 = vmatpush1.bf16.msra.mxu0 0
  %392 = vmatprep.subr.bf16.mxu0 0
  %393 = vmatpush1.bf16.msra.mxu0 0
  %394 = vmatprep.subr.bf16.mxu0 0
  %395 = vmatpush1.bf16.msra.mxu0 0
  %396 = vmatprep.subr.bf16.mxu0 0
  %397 = vmatpush1.bf16.msra.mxu0 0
  %398 = vmatprep.subr.bf16.mxu0 0
  %399 = vmatpush1.bf16.msra.mxu0 0
  %400 = vmatprep.subr.bf16.mxu0 0
  %401 = vmatpush1.bf16.msra.mxu0 0
  %402 = vmatprep.subr.bf16.mxu0 0
  %403 = vmatpush1.bf16.msra.mxu0 0
  %404 = vmatprep.subr.bf16.mxu0 0
  %405 = vmatpush1.bf16.msra.mxu0 0
  %406 = vmatprep.subr.bf16.mxu0 0
  %407 = vmatpush1.bf16.msra.mxu0 0
  %408 = vmatprep.subr.bf16.mxu0 0
  %409 = vmatpush1.bf16.msra.mxu0 0
  %410 = vmatprep.subr.bf16.mxu0 0
  %411 = vmatpush1.bf16.msra.mxu0 0
  %412 = vmatprep.subr.bf16.mxu0 0
  %413 = vmatpush1.bf16.msra.mxu0 0
  %414 = vmatprep.mubr.bf16.mxu0 0
  %415 = vmatmul.mubr.bf16.gmra.mrb[0].mxu0 %v151
  %v416 = vpop.f32.mrb[0].mxu0
  %v417 = vadd.f32 %v44, %v416
  %v418 = vpop.f32.mrb[0].mxu0
  %v419 = vadd.f32 %v44, %v418
  %v420 = vpop.f32.mrb[0].mxu0
  %v421 = vadd.f32 %v49, %v420
  %v422 = vpop.f32.mrb[0].mxu0
  %v423 = vadd.f32 %v49, %v422
  %424 = vmatprep.mubr.bf16.mxu0 0
  %425 = vmatmul.mubr.bf16.gmra.mrb[0].mxu0 %v154
  %v426 = vpop.f32.mrb[0].mxu0
  %v427 = vadd.f32 %v54, %v426
  %v428 = vpop.f32.mrb[0].mxu0
  %v429 = vadd.f32 %v54, %v428
  %v430 = vpop.f32.mrb[0].mxu0
  %v431 = vadd.f32 %v59, %v430
  %v432 = vpop.f32.mrb[0].mxu0
  %v433 = vadd.f32 %v59, %v432
  %434 = vmatprep.mubr.bf16.mxu0 0
  %435 = vmatmul.mubr.bf16.gmra.mrb[0].mxu0 %v157
  %v436 = vpop.f32.mrb[0].mxu0
  %v437 = vadd.f32 %v64, %v436
  %v438 = vpop.f32.mrb[0].mxu0
  %v439 = vadd.f32 %v64, %v438
  %v440 = vpop.f32.mrb[0].mxu0
  %v441 = vadd.f32 %v69, %v440
  %v442 = vpop.f32.mrb[0].mxu0
  %v443 = vadd.f32 %v69, %v442
  %444 = vmatprep.mubr.bf16.mxu0 0
  %445 = vmatmul.mubr.bf16.gmra.mrb[0].mxu0 %v160
  %v446 = vpop.f32.mrb[0].mxu0
  %v447 = vadd.f32 %v74, %v446
  %v448 = vpop.f32.mrb[0].mxu0
  %v449 = vadd.f32 %v74, %v448
  %v450 = vpop.f32.mrb[0].mxu0
  %v451 = vadd.f32 %v79, %v450
  %v452 = vpop.f32.mrb[0].mxu0
  %v453 = vadd.f32 %v79, %v452
  %454 = vdwg.mxu0
  %v455 = vmax.f32 %v417, 0.0
  %v456 = vmax.f32 %v419, 0.0
  %v457 = vmax.f32 %v421, 0.0
  %v458 = vmax.f32 %v423, 0.0
  %v459 = vmax.f32 %v427, 0.0
  %v460 = vmax.f32 %v429, 0.0
  %v461 = vmax.f32 %v431, 0.0
  %v462 = vmax.f32 %v433, 0.0
  %v463 = vmax.f32 %v437, 0.0
  %v464 = vmax.f32 %v439, 0.0
  %v465 = vmax.f32 %v441, 0.0
  %v466 = vmax.f32 %v443, 0.0
  %v467 = vmax.f32 %v447, 0.0
  %v468 = vmax.f32 %v449, 0.0
  %v469 = vmax.f32 %v451, 0.0
  %v470 = vmax.f32 %v453, 0.0
  %v471 = vpack.c.bf16 %v457, %v455
  %v472 = vpack.c.bf16 %v458, %v456
  %v473 = vpack.c.bf16 %v461, %v459
  %v474 = vpack.c.bf16 %v462, %v460
  %v475 = vpack.c.bf16 %v465, %v463
  %v476 = vpack.c.bf16 %v466, %v464
  %v477 = vpack.c.bf16 %v469, %v467
  %v478 = vpack.c.bf16 %v470, %v468
  %479 = vmatprep.subr.bf16.mxu0 %v472
  %480 = vmatpush1.bf16.msra.mxu0 %v471
  %481 = vmatprep.subr.bf16.mxu0 %v474
  %482 = vmatpush1.bf16.msra.mxu0 %v473
  %483 = vmatprep.subr.bf16.mxu0 %v476
  %484 = vmatpush1.bf16.msra.mxu0 %v475
  %485 = vmatprep.subr.bf16.mxu0 %v478
  %486 = vmatpush1.bf16.msra.mxu0 %v477
  %487 = vmatprep.subr.bf16.mxu0 0
  %488 = vmatpush1.bf16.msra.mxu0 0
  %489 = vmatprep.subr.bf16.mxu0 0
  %490 = vmatpush1.bf16.msra.mxu0 0
  %491 = vmatprep.subr.bf16.mxu0 0
  %492 = vmatpush1.bf16.msra.mxu0 0
  %493 = vmatprep.subr.bf16.mxu0 0
  %494 = vmatpush1.bf16.msra.mxu0 0
  %495 = vmatprep.subr.bf16.mxu0 0
  %496 = vmatpush1.bf16.msra.mxu0 0
  %497 = vmatprep.subr.bf16.mxu0 0
  %498 = vmatpush1.bf16.msra.mxu0 0
  %499 = vmatprep.subr.bf16.mxu0 0
  %500 = vmatpush1.bf16.msra.mxu0 0
  %501 = vmatprep.subr.bf16.mxu0 0
  %502 = vmatpush1.bf16.msra.mxu0 0
  %503 = vmatprep.subr.bf16.mxu0 0
  %504 = vmatpush1.bf16.msra.mxu0 0
  %505 = vmatprep.subr.bf16.mxu0 0
  %506 = vmatpush1.bf16.msra.mxu0 0
  %507 = vmatprep.subr.bf16.mxu0 0
  %508 = vmatpush1.bf16.msra.mxu0 0
  %509 = vmatprep.subr.bf16.mxu0 0
  %510 = vmatpush1.bf16.msra.mxu0 0
  %511 = vmatprep.mubr.bf16.mxu0 0
  %512 = vmatmul.mubr.bf16.gmra.mrb[0].mxu0 %v271
  %v513 = vpop.f32.mrb[0].mxu0
  %v514 = vadd.f32 %v88, %v513
  %v515 = vpop.f32.mrb[0].mxu0
  %v516 = vadd.f32 %v88, %v515
  %v517 = vpop.f32.mrb[0].mxu0
  %v518 = vadd.f32 %v93, %v517
  %v519 = vpop.f32.mrb[0].mxu0
  %v520 = vadd.f32 %v93, %v519
  %521 = vmatprep.mubr.bf16.mxu0 0
  %522 = vmatmul.mubr.bf16.gmra.mrb[0].mxu0 %v274
  %v523 = vpop.f32.mrb[0].mxu0
  %v524 = vadd.f32 %v98, %v523
  %v525 = vpop.f32.mrb[0].mxu0
  %v526 = vadd.f32 %v98, %v525
  %v527 = vpop.f32.mrb[0].mxu0
  %v528 = vadd.f32 %v103, %v527
  %v529 = vpop.f32.mrb[0].mxu0
  %v530 = vadd.f32 %v103, %v529
  %531 = vdwg.mxu0
  %v532 = vpack.c.bf16 %v518, %v514
  %v533 = vpack.c.bf16 %v520, %v516
  %v534 = vpack.c.bf16 %v528, %v524
  %v535 = vpack.c.bf16 %v530, %v526
  %v540 = vunpack.c.l.b16 %v532
  %v541 = vunpack.c.l.b16 %v533
  %v542 = vunpack.c.h.b16 %v532
  %v543 = vunpack.c.h.b16 %v533
  %v544 = vunpack.c.l.b16 %v534
  %v545 = vunpack.c.l.b16 %v535
  %v546 = vunpack.c.h.b16 %v534
  %v547 = vunpack.c.h.b16 %v535
  %v548 = vpack.c.b16 %v541, %v540
  %v549 = vpack.c.b16 %v543, %v542
  %v550 = vpack.c.b16 %v545, %v544
  %v551 = vpack.c.b16 %v547, %v546
  %s556 = scalar_lea.vmem %s5, 32
  %557 = vst [vmem:[%s556] sm:$0xff] %v548
  %558 = vst [vmem:[%s556 + $0x8] sm:$0xff] %v549
  %559 = vst [vmem:[%s556 + $0x10] sm:$0xff] %v550
  %560 = vst [vmem:[%s556 + $0x18] sm:$0xff] %v551
  // Predicated region
  $region22: #{prehead.1} parent=0 // pred_check
    _
  $region23: #{prehead.1} parent=0 // pred_check_branch
    %562 = sbr.rel (0) target = $region25
  $region24: #{prehead.1} parent=0 // pred_region
    _
  $region25: #{prehead.1} parent=0 // pred_fallthru
    _
  // Predicated region
  $region26: #{prehead.1} parent=0 // pred_check
    _
  $region27: #{prehead.1} parent=0 // pred_check_branch
    %564 = sbr.rel (0) target = $region29
  $region28: #{prehead.1} parent=0 // pred_region
    _
  $region29: #{prehead.1} parent=0 // pred_fallthru
    _

</llo_original>
